<compile_context>
chip_gen: v7x
topology: tpu7x:2x2x1
jax: 0.10.0
libtpu: 0.0.40
codegen_flags: <defaults>
</compile_context>

<pallas_src>
from functools import partial

import jax
import jax.numpy as jnp
from jax.experimental import pallas as pl
from jax.experimental.pallas import tpu as pltpu


def block2d_kernel(p_ref, w_ref, b_ref, gmat_ref, gamma_ref, beta_ref, o_ref,
                   *, inv_n, eps, hw_block):
    # p_ref:     (1, K_pad, HW_tile)  im2col patches for this HW tile (bf16/f32)
    # w_ref:     (CB, K_pad)          conv weight block, K-order (cin, dh, dw)
    # b_ref:     (CB, 1)              conv bias column (f32)
    # gmat_ref:  (CB, CB)             same-group membership matrix (f32)
    # gamma_ref: (CB, 1)              GroupNorm scale (f32)
    # beta_ref:  (CB, 1)              GroupNorm shift (f32)
    # o_ref:     (1, CB, HW)          f32 output block, resident across HW tiles
    t = pl.program_id(2)
    nt = pl.num_programs(2)

    # --- 3x3 conv for this HW tile: a single MXU matmul, f32 accumulation ---
    acc = jnp.dot(w_ref[...], p_ref[0],
                  preferred_element_type=jnp.float32)            # (CB, HW_tile)
    acc = acc + b_ref[...]                                       # per-channel bias

    # Stash the f32 pre-norm conv output in the resident output block.
    start = pl.multiple_of(t * hw_block, hw_block)
    o_ref[0, :, pl.ds(start, hw_block)] = acc.astype(o_ref.dtype)

    # --- finalize on the last HW tile: exact two-pass GroupNorm + SiLU ---
    @pl.when(t == nt - 1)
    def _():
        x = o_ref[0]                                             # (CB, HW) f32
        # Reduce over lanes (HW) first, THEN the tiny gmat matmul sums each
        # group's channels and broadcasts the result back to its members.
        ch_sum = jnp.sum(x, axis=-1, keepdims=True)              # (CB, 1)
        mean_c = jnp.dot(gmat_ref[...], ch_sum,
                         preferred_element_type=jnp.float32) * inv_n
        cen = x - mean_c
        sq_sum = jnp.sum(cen * cen, axis=-1, keepdims=True)      # (CB, 1)
        var_c = jnp.dot(gmat_ref[...], sq_sum,
                        preferred_element_type=jnp.float32) * inv_n
        inv_std = jax.lax.rsqrt(var_c + eps)                     # (CB, 1)

        y = cen * (inv_std * gamma_ref[...]) + beta_ref[...]
        y = y * jax.nn.sigmoid(y)                                # SiLU (EUP)
        o_ref[0] = y.astype(o_ref.dtype)


def _im2col_nchw(x_nchw, H, W):
    """(N, Cin, H, W) -> (N, 9*Cin, H*W) patches; K ordered (cin, dh, dw)."""
    N, Cin = x_nchw.shape[0], x_nchw.shape[1]
    xp = jnp.pad(x_nchw, ((0, 0), (0, 0), (1, 1), (1, 1)))
    taps = [xp[:, :, dh:dh + H, dw:dw + W]
            for dh in range(3) for dw in range(3)]               # 9 x (N,Cin,H,W)
    p = jnp.stack(taps, axis=2)                                  # (N, Cin, 9, H, W)
    return p.reshape(N, Cin * 9, H * W)


def _round_up(v, m):
    return (v + m - 1) // m * m


def _padded_block_bytes(shape, dtype):
    """Crude (8,128)-tile-padded VMEM footprint of one buffer."""
    s = list(shape)
    if len(s) >= 1:
        s[-1] = _round_up(s[-1], 128)
    if len(s) >= 2:
        s[-2] = _round_up(s[-2], 8)
    n = 1
    for d in s:
        n *= int(d)
    return n * jnp.dtype(dtype).itemsize


def block2d(x_nchw, w_oihw, b, gamma, beta, *, groups=8, eps=1e-5,
            hw_block=None, cout_block=None, compute_dtype=jnp.bfloat16):
    N, Cin, H, W = x_nchw.shape
    Cout = w_oihw.shape[0]
    assert Cout % groups == 0, "GroupNorm requires Cout divisible by groups"
    cpg = Cout // groups
    HW = H * W
    K = 9 * Cin
    kmult = 8 if jnp.dtype(compute_dtype).itemsize == 4 else 16
    K_pad = _round_up(K, kmult)                  # sublane-aligned K (zero-padded)

    # --- spatial (HW) tile: multiple of 128 lanes, sized for v7x VMEM ---
    if hw_block is None:
        hw_block = HW
        if HW % 128 == 0:
            for cand in (2048, 1024, 512, 256, 128):
                if HW % cand == 0:
                    hw_block = cand
                    break
    assert HW % hw_block == 0
    assert hw_block % 128 == 0 or hw_block == HW
    n_hw = HW // hw_block

    # --- Cout block: group-aligned; second "parallel" grid axis (v7x) ---
    if cout_block is None:
        cout_block = Cout
    assert Cout % cout_block == 0
    assert cout_block % cpg == 0, "Cout block must not split a GroupNorm group"
    assert cout_block % 8 == 0 or cout_block == Cout
    n_cb = Cout // cout_block

    # im2col patches (K-order (cin, dh, dw) matches w_oihw.reshape(Cout, 9*Cin)),
    # emitted in bf16 (compute_dtype) to halve the dominant HBM traffic.
    patches = _im2col_nchw(x_nchw, H, W)                         # (N, K, HW) f32
    if K_pad != K:
        patches = jnp.pad(patches, ((0, 0), (0, K_pad - K), (0, 0)))
    patches = patches.astype(compute_dtype)

    w_mat = w_oihw.reshape(Cout, K)
    if K_pad != K:
        w_mat = jnp.pad(w_mat, ((0, 0), (0, K_pad - K)))
    w_mat = w_mat.astype(compute_dtype)

    b_col = b.reshape(Cout, 1).astype(jnp.float32)
    gamma_col = gamma.reshape(Cout, 1).astype(jnp.float32)
    beta_col = beta.reshape(Cout, 1).astype(jnp.float32)

    # Same-group membership within one Cout block (blocks are group-aligned,
    # so the pattern is identical for every block).
    ch = jnp.arange(cout_block)
    gmat = (ch[:, None] // cpg == ch[None, :] // cpg).astype(jnp.float32)

    kernel = partial(block2d_kernel, inv_n=1.0 / float(HW * cpg), eps=eps,
                     hw_block=hw_block)

    # Explicit scoped-VMEM budget: double-buffered blocks + f32 temporaries.
    est = 2 * (_padded_block_bytes((K_pad, hw_block), compute_dtype)
               + _padded_block_bytes((cout_block, K_pad), compute_dtype)
               + _padded_block_bytes((cout_block, HW), jnp.float32)
               + _padded_block_bytes((cout_block, cout_block), jnp.float32)
               + 3 * _padded_block_bytes((cout_block, 1), jnp.float32))
    est += 4 * _padded_block_bytes((cout_block, HW), jnp.float32)
    vmem_limit = int(min(max(2 * est, 32 * 1024 * 1024), 48 * 1024 * 1024))

    out = pl.pallas_call(
        kernel,
        out_shape=jax.ShapeDtypeStruct((N, Cout, HW), jnp.float32),
        grid=(N, n_cb, n_hw),
        in_specs=[
            pl.BlockSpec((1, K_pad, hw_block), lambda n, c, t: (n, 0, t)),
            pl.BlockSpec((cout_block, K_pad), lambda n, c, t: (c, 0)),
            pl.BlockSpec((cout_block, 1), lambda n, c, t: (c, 0)),
            pl.BlockSpec((cout_block, cout_block), lambda n, c, t: (0, 0)),
            pl.BlockSpec((cout_block, 1), lambda n, c, t: (c, 0)),
            pl.BlockSpec((cout_block, 1), lambda n, c, t: (c, 0)),
        ],
        out_specs=pl.BlockSpec((1, cout_block, HW), lambda n, c, t: (n, c, 0)),
        compiler_params=pltpu.CompilerParams(
            dimension_semantics=("parallel", "parallel", "arbitrary"),
            vmem_limit_bytes=vmem_limit),
    )(patches, w_mat, b_col, gmat, gamma_col, beta_col)

    # Free reshape (same memory order) straight to NCHW -- no transpose.
    return out.reshape(N, Cout, H, W)


def _reference(x_nchw, w_oihw, b, gamma, beta, *, groups=8, eps=1e-5):
    # Pure-JAX reference for verification.
    y = jax.lax.conv_general_dilated(
        x_nchw, w_oihw, window_strides=(1, 1), padding=((1, 1), (1, 1)),
        dimension_numbers=("NCHW", "OIHW", "NCHW"))
    y = y + b[None, :, None, None]
    N, C, H, W = y.shape
    yg = y.reshape(N, groups, C // groups, H, W)
    mean = jnp.mean(yg, axis=(2, 3, 4), keepdims=True)
    var = jnp.mean((yg - mean) ** 2, axis=(2, 3, 4), keepdims=True)
    yg = (yg - mean) / jnp.sqrt(var + eps)
    y = yg.reshape(N, C, H, W) * gamma[None, :, None, None] + beta[None, :, None, None]
    return y * jax.nn.sigmoid(y)


if __name__ == "__main__":
    # Module config: dim=4 -> dim_out=16, groups=8 (group size 2)
    N, Cin, Cout, H, W, groups = 2, 4, 16, 16, 16, 8

    key = jax.random.PRNGKey(0)
    kx, kw, kb = jax.random.split(key, 3)
    x = jax.random.normal(kx, (N, Cin, H, W), jnp.float32)
    w = jax.random.normal(kw, (Cout, Cin, 3, 3), jnp.float32) * 0.1
    b = jax.random.normal(kb, (Cout,), jnp.float32) * 0.1
    gamma = jnp.ones((Cout,), jnp.float32)    # GroupNorm default init
    beta = jnp.zeros((Cout,), jnp.float32)

    ref = _reference(x, w, b, gamma, beta, groups=groups)

    # Exact f32-operand path (tight tolerance); hw_block=128 / cout_block=8
    # deliberately exercise the multi-tile GN accumulator and Cout blocking.
    out_f32 = block2d(x, w, b, gamma, beta, groups=groups,
                      compute_dtype=jnp.float32, hw_block=128, cout_block=8)
    out_f32 = jax.block_until_ready(out_f32)
    assert out_f32.shape == (N, Cout, H, W)
    assert jnp.allclose(out_f32, ref, rtol=1e-4, atol=1e-4), \
        float(jnp.max(jnp.abs(out_f32 - ref)))

    # Production path: bf16 matmul operands, f32 accumulation / GN stats.
    out_bf16 = block2d(x, w, b, gamma, beta, groups=groups,
                       hw_block=128, cout_block=8)
    out_bf16 = jax.block_until_ready(out_bf16)
    assert out_bf16.shape == (N, Cout, H, W)
    assert jnp.allclose(out_bf16, ref, rtol=5e-2, atol=5e-2), \
        float(jnp.max(jnp.abs(out_bf16 - ref)))

    print("KERNEL_OK")
</pallas_src>

<mosaic_0001>
module attributes {stable_mosaic.version = 11 : i64} {
  func.func @block2d_kernel(%arg0: i32, %arg1: i32, %arg2: i32, %arg3: memref<1x40x128xf32, #tpu.memory_space<vmem>>, %arg4: memref<8x40xf32, #tpu.memory_space<vmem>>, %arg5: memref<8x1xf32, #tpu.memory_space<vmem>>, %arg6: memref<8x8xf32, #tpu.memory_space<vmem>>, %arg7: memref<8x1xf32, #tpu.memory_space<vmem>>, %arg8: memref<8x1xf32, #tpu.memory_space<vmem>>, %arg9: memref<1x8x256xf32, #tpu.memory_space<vmem>>) attributes {dimension_semantics = [#tpu.dimension_semantics<parallel>, #tpu.dimension_semantics<parallel>, #tpu.dimension_semantics<arbitrary>], iteration_bounds = array<i64: 2, 2, 2>, scalar_prefetch = 0 : i64, scratch_operands = 0 : i64, tpu.core_type = #tpu.core_type<tc>, window_params = [{transform_indices = @transform_0, window_bounds = array<i64: 1, 40, 128>}, {transform_indices = @transform_1, window_bounds = array<i64: 8, 40>}, {transform_indices = @transform_2, window_bounds = array<i64: 8, 1>}, {pipeline_mode = #tpu.pipeline_mode<synchronous>, transform_indices = @transform_3, window_bounds = array<i64: 8, 8>}, {transform_indices = @transform_4, window_bounds = array<i64: 8, 1>}, {transform_indices = @transform_5, window_bounds = array<i64: 8, 1>}, {transform_indices = @transform_6, window_bounds = array<i64: 1, 8, 256>}]} {
    %c0 = arith.constant 0 : index
    %c0_0 = arith.constant 0 : index
    %0 = vector.load %arg4[%c0, %c0_0] : memref<8x40xf32, #tpu.memory_space<vmem>>, vector<8x40xf32>
    %c0_1 = arith.constant 0 : index
    %c0_2 = arith.constant 0 : index
    %c0_3 = arith.constant 0 : index
    %1 = vector.load %arg3[%c0_1, %c0_2, %c0_3] : memref<1x40x128xf32, #tpu.memory_space<vmem>>, vector<1x40x128xf32>
    %2 = vector.shape_cast %1 : vector<1x40x128xf32> to vector<40x128xf32>
    %cst = arith.constant dense<0.000000e+00> : vector<8x128xf32>
    %3 = tpu.matmul %0, %2, %cst {dimension_numbers = #tpu.dot_dimension_numbers<[1], [0], [0], [1], [0, 0, 1, 1], [], []>} : vector<8x40xf32>, vector<40x128xf32>, vector<8x128xf32> -> vector<8x128xf32>
    %c0_4 = arith.constant 0 : index
    %c0_5 = arith.constant 0 : index
    %4 = vector.load %arg5[%c0_4, %c0_5] : memref<8x1xf32, #tpu.memory_space<vmem>>, vector<8x1xf32>
    %5 = vector.broadcast %4 : vector<8x1xf32> to vector<8x128xf32>
    %6 = arith.addf %3, %5 : vector<8x128xf32>
    %c128_i32 = arith.constant 128 : i32
    %7 = arith.muli %arg2, %c128_i32 : i32
    %8 = tpu.assume_multiple %7, 128 : i32
    %c0_6 = arith.constant 0 : index
    %c0_7 = arith.constant 0 : index
    %9 = arith.index_cast %8 : i32 to index
    %10 = vector.load %arg9[%c0_6, %c0_7, %9] : memref<1x8x256xf32, #tpu.memory_space<vmem>>, vector<1x8x128xf32>
    %11 = vector.shape_cast %10 : vector<1x8x128xf32> to vector<8x128xf32>
    %12 = vector.shape_cast %6 : vector<8x128xf32> to vector<1x8x128xf32>
    tpu.vector_store %arg9[%c0_6, %c0_7, %9], %12 {strides = array<i32>} : memref<1x8x256xf32, #tpu.memory_space<vmem>>, vector<1x8x128xf32>,
    %c1_i32 = arith.constant 1 : i32
    %13 = arith.cmpi eq, %arg2, %c1_i32 : i32
    %14 = arith.extui %13 : i1 to i32
    %c0_i32 = arith.constant 0 : i32
    %15 = arith.cmpi ne, %14, %c0_i32 : i32
    scf.if %15 {
      %c0_8 = arith.constant 0 : index
      %c0_9 = arith.constant 0 : index
      %c0_10 = arith.constant 0 : index
      %16 = vector.load %arg9[%c0_8, %c0_9, %c0_10] : memref<1x8x256xf32, #tpu.memory_space<vmem>>, vector<1x8x256xf32>
      %17 = vector.shape_cast %16 : vector<1x8x256xf32> to vector<8x256xf32>
      %cst_11 = arith.constant dense<0.000000e+00> : vector<8xf32>
      %18 = vector.multi_reduction <add>, %17, %cst_11 [1] : vector<8x256xf32> to vector<8xf32>
      %19 = vector.shape_cast %18 : vector<8xf32> to vector<8x1xf32>
      %c0_12 = arith.constant 0 : index
      %c0_13 = arith.constant 0 : index
      %20 = vector.load %arg6[%c0_12, %c0_13] : memref<8x8xf32, #tpu.memory_space<vmem>>, vector<8x8xf32>
      %cst_14 = arith.constant dense<0.000000e+00> : vector<8x1xf32>
      %21 = tpu.matmul %20, %19, %cst_14 {dimension_numbers = #tpu.dot_dimension_numbers<[1], [0], [0], [1], [0, 0, 1, 1], [], []>} : vector<8x8xf32>, vector<8x1xf32>, vector<8x1xf32> -> vector<8x1xf32>
      %cst_15 = arith.constant 0.001953125 : f32
      %22 = vector.broadcast %cst_15 : f32 to vector<8x1xf32>
      %23 = arith.mulf %21, %22 : vector<8x1xf32>
      %24 = vector.broadcast %23 : vector<8x1xf32> to vector<8x256xf32>
      %25 = arith.subf %17, %24 : vector<8x256xf32>
      %26 = arith.mulf %25, %25 : vector<8x256xf32>
      %cst_16 = arith.constant dense<0.000000e+00> : vector<8xf32>
      %27 = vector.multi_reduction <add>, %26, %cst_16 [1] : vector<8x256xf32> to vector<8xf32>
      %28 = vector.shape_cast %27 : vector<8xf32> to vector<8x1xf32>
      %c0_17 = arith.constant 0 : index
      %c0_18 = arith.constant 0 : index
      %29 = vector.load %arg6[%c0_17, %c0_18] : memref<8x8xf32, #tpu.memory_space<vmem>>, vector<8x8xf32>
      %cst_19 = arith.constant dense<0.000000e+00> : vector<8x1xf32>
      %30 = tpu.matmul %29, %28, %cst_19 {dimension_numbers = #tpu.dot_dimension_numbers<[1], [0], [0], [1], [0, 0, 1, 1], [], []>} : vector<8x8xf32>, vector<8x1xf32>, vector<8x1xf32> -> vector<8x1xf32>
      %cst_20 = arith.constant 0.001953125 : f32
      %31 = vector.broadcast %cst_20 : f32 to vector<8x1xf32>
      %32 = arith.mulf %30, %31 : vector<8x1xf32>
      %cst_21 = arith.constant 9.99999974E-6 : f32
      %33 = vector.broadcast %cst_21 : f32 to vector<8x1xf32>
      %34 = arith.addf %32, %33 : vector<8x1xf32>
      %35 = math.rsqrt %34 : vector<8x1xf32>
      %c0_22 = arith.constant 0 : index
      %c0_23 = arith.constant 0 : index
      %36 = vector.load %arg7[%c0_22, %c0_23] : memref<8x1xf32, #tpu.memory_space<vmem>>, vector<8x1xf32>
      %37 = arith.mulf %35, %36 : vector<8x1xf32>
      %38 = vector.broadcast %37 : vector<8x1xf32> to vector<8x256xf32>
      %39 = arith.mulf %25, %38 : vector<8x256xf32>
      %c0_24 = arith.constant 0 : index
      %c0_25 = arith.constant 0 : index
      %40 = vector.load %arg8[%c0_24, %c0_25] : memref<8x1xf32, #tpu.memory_space<vmem>>, vector<8x1xf32>
      %41 = vector.broadcast %40 : vector<8x1xf32> to vector<8x256xf32>
      %42 = arith.addf %39, %41 : vector<8x256xf32>
      %43 = arith.negf %42 : vector<8x256xf32>
      %44 = math.exp %43 : vector<8x256xf32>
      %cst_26 = arith.constant 1.000000e+00 : f32
      %45 = vector.broadcast %cst_26 : f32 to vector<8x256xf32>
      %46 = arith.addf %45, %44 : vector<8x256xf32>
      %47 = arith.divf %45, %46 : vector<8x256xf32>
      %48 = arith.mulf %42, %47 : vector<8x256xf32>
      %c0_27 = arith.constant 0 : index
      %c0_28 = arith.constant 0 : index
      %c0_29 = arith.constant 0 : index
      %49 = vector.load %arg9[%c0_27, %c0_28, %c0_29] : memref<1x8x256xf32, #tpu.memory_space<vmem>>, vector<1x8x256xf32>
      %50 = vector.shape_cast %49 : vector<1x8x256xf32> to vector<8x256xf32>
      %51 = vector.shape_cast %48 : vector<8x256xf32> to vector<1x8x256xf32>
      tpu.vector_store %arg9[%c0_27, %c0_28, %c0_29], %51 {strides = array<i32>} : memref<1x8x256xf32, #tpu.memory_space<vmem>>, vector<1x8x256xf32>,
    } else {
    }
    return
  }
  func.func @transform_0(%arg0: i32, %arg1: i32, %arg2: i32) -> (i32, i32, i32) {
    %c0_i32 = arith.constant 0 : i32
    %c0_i32_0 = arith.constant 0 : i32
    return %arg0, %c0_i32, %arg2 : i32, i32, i32
  }
  func.func @transform_1(%arg0: i32, %arg1: i32, %arg2: i32) -> (i32, i32) {
    %c0_i32 = arith.constant 0 : i32
    %c0_i32_0 = arith.constant 0 : i32
    return %arg1, %c0_i32 : i32, i32
  }
  func.func @transform_2(%arg0: i32, %arg1: i32, %arg2: i32) -> (i32, i32) {
    %c0_i32 = arith.constant 0 : i32
    %c0_i32_0 = arith.constant 0 : i32
    return %arg1, %c0_i32 : i32, i32
  }
  func.func @transform_3(%arg0: i32, %arg1: i32, %arg2: i32) -> (i32, i32) {
    %c0_i32 = arith.constant 0 : i32
    %c0_i32_0 = arith.constant 0 : i32
    %c0_i32_1 = arith.constant 0 : i32
    return %c0_i32, %c0_i32_0 : i32, i32
  }
  func.func @transform_4(%arg0: i32, %arg1: i32, %arg2: i32) -> (i32, i32) {
    %c0_i32 = arith.constant 0 : i32
    %c0_i32_0 = arith.constant 0 : i32
    return %arg1, %c0_i32 : i32, i32
  }
  func.func @transform_5(%arg0: i32, %arg1: i32, %arg2: i32) -> (i32, i32) {
    %c0_i32 = arith.constant 0 : i32
    %c0_i32_0 = arith.constant 0 : i32
    return %arg1, %c0_i32 : i32, i32
  }
  func.func @transform_6(%arg0: i32, %arg1: i32, %arg2: i32) -> (i32, i32, i32) {
    %c0_i32 = arith.constant 0 : i32
    %c0_i32_0 = arith.constant 0 : i32
    return %arg0, %arg1, %c0_i32 : i32, i32, i32
  }
}

</mosaic_0001>

<llo_original>
// kernel: tpu_custom_call.1
$region0: #{tpu_custom_call.1}
  #allocation0 [shape = 'u32[]', space=smem, size = 0x4, offset = 0x4, fixed_abs, tag = 'smem constant byte address 0x4 - core index']
  #allocation1 [shape = 'u32[144,128]{1,0:T(1,128)}', space=vmem, size = 0x12000, scoped, tag = 'internal scratch']
  %s0 = inlined_call_operand.hbm [shape: f32[2,40,256], index: 0, kind: input, shape index: {}]
  %s1 = inlined_call_operand.vmem [shape: f32[16,40], index: 1, kind: input, shape index: {}]
  %s2 = inlined_call_operand.vmem [shape: f32[16,1], index: 2, kind: input, shape index: {}]
  %s3 = inlined_call_operand.vmem [shape: f32[8,8], index: 3, kind: input, shape index: {}]
  %s4 = inlined_call_operand.vmem [shape: f32[16,1], index: 4, kind: input, shape index: {}]
  %s5 = inlined_call_operand.vmem [shape: f32[16,1], index: 5, kind: input, shape index: {}]
  %s6 = inlined_call_operand.hbm [shape: f32[2,16,256], index: 6, kind: output, shape index: {}]
  %s7 = sld [smem:[#allocation0]]
  $region65: #{tpu_custom_call.1} parent=0
    _
  %s9 = ssub.s32 1, %s7
  %s10 = scalar_select 0, %s9, %s7
  $region1: #{tpu_custom_call.1} parent=0
    #allocation2 [shape = 'u8[40960]{0}', space=vmem, size = 0xa000, scoped, tag = 'input window, operand 0']
    #allocation3 [shape = 's32[2]{0}', space=sflag, size = 0x8, scoped, tag = 'scoped memory for tpu_custom_call.1']
    #allocation4 [shape = 's32[2]{0}', space=sflag, size = 0x8, scoped, tag = 'scoped memory for tpu_custom_call.1']
    #allocation5 [shape = 'u8[16384]{0}', space=vmem, size = 0x4000, scoped, tag = 'output window, operand 0']
    %11 = vsyncpa [#allocation3], 0
    %s12 = scalar_lea.sflag [#allocation3], 1
    %13 = vsyncpa %s12, 0
    %14 = vsyncpa [#allocation4], 0
    %s15 = scalar_lea.sflag [#allocation4], 1
    %16 = vsyncpa %s15, 0
    loop: start=0, step=1, limit=10
    $region2: #{tpu_custom_call.1} parent=1 // loop_pre_header
      _
    $region3: #{tpu_custom_call.1} parent=1 // loop_header
      %s18 = sphi 0, %s22
      %p19 = scmp.ge.s32.totalorder %s18, 10
      %s25 = sphi 0, %s44
      %s26 = sphi 0, %s40
      %s27 = sphi 0, %s36
      %s28 = sphi 0, %s25
      %s29 = sphi 0, %s26
      %s30 = sphi 0, %s27
      %s31 = sphi 0, %s28
      %s32 = sphi 0, %s29
      %s33 = sphi 0, %s30
      %s49 = sphi 0, %s51
      %s52 = sphi 0, %s49
      %s53 = sphi 0, %s52
      %s69 = sphi 0, %s53
      %s75 = sphi 0, %s77
      %s78 = sphi 0, %s75
      %s79 = sphi 0, %s78
      %s95 = sphi 0, %s79
      %s101 = sphi 0, %s103
      %s104 = sphi 0, %s101
      %s105 = sphi 0, %s104
      %s121 = sphi 0, %s105
      %s125 = sphi 0, %s125
      %s127 = sphi 0, %s125
      %s128 = sphi 0, %s127
      %s142 = sphi 0, %s128
      %s148 = sphi 0, %s150
      %s151 = sphi 0, %s148
      %s152 = sphi 0, %s151
      %s168 = sphi 0, %s152
      %s174 = sphi 0, %s176
      %s177 = sphi 0, %s174
      %s178 = sphi 0, %s177
      %s194 = sphi 0, %s178
      %s202 = sphi 0, %s204
      %s205 = sphi 0, %s202
      %s206 = sphi 0, %s205
      %s222 = sphi 0, %s206
    $region4: #{tpu_custom_call.1} parent=1 // loop_header_branch
      %21 = sbr.rel (%p19) target = $region8
    $region5: #{tpu_custom_call.1} parent=1 // loop_body
      %s23 = ssub.s32 %s18, 1
      %s24 = ssub.s32 %s18, 2
      %s34 = sadd.s32 1, %s27
      %p35 = scmp.ge.s32.totalorder %s34, 2
      %s36 = scalar_select %p35, 0, %s34
      %s37 = sadd.s32 1, %s26
      %s38 = scalar_select %p35, %s37, %s26
      %p39 = scmp.ge.s32.totalorder %s38, 2
      %s40 = scalar_select %p39, 0, %s38
      %s41 = sadd.s32 1, %s25
      %s42 = scalar_select %p39, %s41, %s25
      %p43 = scmp.ge.s32.totalorder %s42, 2
      %s44 = scalar_select %p43, 0, %s42
      %s45 = ssub.s32 %s25, %s44
      %s46 = ssub.s32 %s27, %s36
      %s47 = sor.u32 %s45, %s46
      %p48 = scmp.eq.s32.totalorder %s47, 0
      %s50 = sadd.s32 %s49, 1
      %s51 = scalar_select %p48, %s49, %s50
      %p54 = pneg %p48
      %p55 = scmp.eq.s32.totalorder %s18, 7
      %p56 = por %p54, %p55
      %p57 = scmp.ne.s32.totalorder %s49, %s52
      %p58 = scmp.eq.s32.totalorder %s18, 0
      %p59 = por %p57, %p58
      %p60 = scmp.ne.s32.totalorder %s49, %s52
      %p61 = scmp.eq.s32.totalorder %s23, 7
      %p62 = por %p60, %p61
      %p63 = scmp.ne.s32.totalorder %s52, %s53
      %p64 = scmp.eq.s32.totalorder %s23, 0
      %p65 = por %p63, %p64
      %p66 = scmp.ne.s32.totalorder %s52, %s53
      %p67 = scmp.eq.s32.totalorder %s24, 7
      %p68 = por %p66, %p67
      %p70 = scmp.ne.s32.totalorder %s53, %s69
      %p71 = scmp.eq.s32.totalorder %s24, 0
      %p72 = por %p70, %p71
      %s73 = ssub.s32 %s26, %s40
      %p74 = scmp.eq.s32.totalorder %s73, 0
      %s76 = sadd.s32 %s75, 1
      %s77 = scalar_select %p74, %s75, %s76
      %p80 = pneg %p74
      %p81 = scmp.eq.s32.totalorder %s18, 7
      %p82 = por %p80, %p81
      %p83 = scmp.ne.s32.totalorder %s75, %s78
      %p84 = scmp.eq.s32.totalorder %s18, 0
      %p85 = por %p83, %p84
      %p86 = scmp.ne.s32.totalorder %s75, %s78
      %p87 = scmp.eq.s32.totalorder %s23, 7
      %p88 = por %p86, %p87
      %p89 = scmp.ne.s32.totalorder %s78, %s79
      %p90 = scmp.eq.s32.totalorder %s23, 0
      %p91 = por %p89, %p90
      %p92 = scmp.ne.s32.totalorder %s78, %s79
      %p93 = scmp.eq.s32.totalorder %s24, 7
      %p94 = por %p92, %p93
      %p96 = scmp.ne.s32.totalorder %s79, %s95
      %p97 = scmp.eq.s32.totalorder %s24, 0
      %p98 = por %p96, %p97
      %s99 = ssub.s32 %s26, %s40
      %p100 = scmp.eq.s32.totalorder %s99, 0
      %s102 = sadd.s32 %s101, 1
      %s103 = scalar_select %p100, %s101, %s102
      %p106 = pneg %p100
      %p107 = scmp.eq.s32.totalorder %s18, 7
      %p108 = por %p106, %p107
      %p109 = scmp.ne.s32.totalorder %s101, %s104
      %p110 = scmp.eq.s32.totalorder %s18, 0
      %p111 = por %p109, %p110
      %p112 = scmp.ne.s32.totalorder %s101, %s104
      %p113 = scmp.eq.s32.totalorder %s23, 7
      %p114 = por %p112, %p113
      %p115 = scmp.ne.s32.totalorder %s104, %s105
      %p116 = scmp.eq.s32.totalorder %s23, 0
      %p117 = por %p115, %p116
      %p118 = scmp.ne.s32.totalorder %s104, %s105
      %p119 = scmp.eq.s32.totalorder %s24, 7
      %p120 = por %p118, %p119
      %p122 = scmp.ne.s32.totalorder %s105, %s121
      %p123 = scmp.eq.s32.totalorder %s24, 0
      %p124 = por %p122, %p123
      %s126 = sadd.s32 %s125, 1
      %p129 = scmp.eq.s32.totalorder %s18, 7
      %p130 = scmp.ne.s32.totalorder %s125, %s127
      %p131 = scmp.eq.s32.totalorder %s18, 0
      %p132 = por %p130, %p131
      %p133 = scmp.ne.s32.totalorder %s125, %s127
      %p134 = scmp.eq.s32.totalorder %s23, 7
      %p135 = por %p133, %p134
      %p136 = scmp.ne.s32.totalorder %s127, %s128
      %p137 = scmp.eq.s32.totalorder %s23, 0
      %p138 = por %p136, %p137
      %p139 = scmp.ne.s32.totalorder %s127, %s128
      %p140 = scmp.eq.s32.totalorder %s24, 7
      %p141 = por %p139, %p140
      %p143 = scmp.ne.s32.totalorder %s128, %s142
      %p144 = scmp.eq.s32.totalorder %s24, 0
      %p145 = por %p143, %p144
      %s146 = ssub.s32 %s26, %s40
      %p147 = scmp.eq.s32.totalorder %s146, 0
      %s149 = sadd.s32 %s148, 1
      %s150 = scalar_select %p147, %s148, %s149
      %p153 = pneg %p147
      %p154 = scmp.eq.s32.totalorder %s18, 7
      %p155 = por %p153, %p154
      %p156 = scmp.ne.s32.totalorder %s148, %s151
      %p157 = scmp.eq.s32.totalorder %s18, 0
      %p158 = por %p156, %p157
      %p159 = scmp.ne.s32.totalorder %s148, %s151
      %p160 = scmp.eq.s32.totalorder %s23, 7
      %p161 = por %p159, %p160
      %p162 = scmp.ne.s32.totalorder %s151, %s152
      %p163 = scmp.eq.s32.totalorder %s23, 0
      %p164 = por %p162, %p163
      %p165 = scmp.ne.s32.totalorder %s151, %s152
      %p166 = scmp.eq.s32.totalorder %s24, 7
      %p167 = por %p165, %p166
      %p169 = scmp.ne.s32.totalorder %s152, %s168
      %p170 = scmp.eq.s32.totalorder %s24, 0
      %p171 = por %p169, %p170
      %s172 = ssub.s32 %s26, %s40
      %p173 = scmp.eq.s32.totalorder %s172, 0
      %s175 = sadd.s32 %s174, 1
      %s176 = scalar_select %p173, %s174, %s175
      %p179 = pneg %p173
      %p180 = scmp.eq.s32.totalorder %s18, 7
      %p181 = por %p179, %p180
      %p182 = scmp.ne.s32.totalorder %s174, %s177
      %p183 = scmp.eq.s32.totalorder %s18, 0
      %p184 = por %p182, %p183
      %p185 = scmp.ne.s32.totalorder %s174, %s177
      %p186 = scmp.eq.s32.totalorder %s23, 7
      %p187 = por %p185, %p186
      %p188 = scmp.ne.s32.totalorder %s177, %s178
      %p189 = scmp.eq.s32.totalorder %s23, 0
      %p190 = por %p188, %p189
      %p191 = scmp.ne.s32.totalorder %s177, %s178
      %p192 = scmp.eq.s32.totalorder %s24, 7
      %p193 = por %p191, %p192
      %p195 = scmp.ne.s32.totalorder %s178, %s194
      %p196 = scmp.eq.s32.totalorder %s24, 0
      %p197 = por %p195, %p196
      %s198 = ssub.s32 %s25, %s44
      %s199 = ssub.s32 %s26, %s40
      %s200 = sor.u32 %s198, %s199
      %p201 = scmp.eq.s32.totalorder %s200, 0
      %s203 = sadd.s32 %s202, 1
      %s204 = scalar_select %p201, %s202, %s203
      %p207 = pneg %p201
      %p208 = scmp.eq.s32.totalorder %s18, 7
      %p209 = por %p207, %p208
      %p210 = scmp.ne.s32.totalorder %s202, %s205
      %p211 = scmp.eq.s32.totalorder %s18, 0
      %p212 = por %p210, %p211
      %p213 = scmp.ne.s32.totalorder %s202, %s205
      %p214 = scmp.eq.s32.totalorder %s23, 7
      %p215 = por %p213, %p214
      %p216 = scmp.ne.s32.totalorder %s205, %s206
      %p217 = scmp.eq.s32.totalorder %s23, 0
      %p218 = por %p216, %p217
      %p219 = scmp.ne.s32.totalorder %s205, %s206
      %p220 = scmp.eq.s32.totalorder %s24, 7
      %p221 = por %p219, %p220
      %p223 = scmp.ne.s32.totalorder %s206, %s222
      %p224 = scmp.eq.s32.totalorder %s24, 0
      %p225 = por %p223, %p224
      %p226 = scmp.le.s32.totalorder 1, %s18
      %p227 = scmp.lt.s32.totalorder %s18, 9
      %p228 = pnand %p226, %p227
      %p229 = pneg %p228
      // Predicated region
      $region9: #{tpu_custom_call.1} parent=5 // pred_check
        _
      $region10: #{tpu_custom_call.1} parent=5 // pred_check_branch
        %231 = sbr.rel (%p228) target = $region12
      $region11: #{tpu_custom_call.1} parent=5 // pred_region
        %s232 = ssub.s32 %s18, 1
        // Predicated region
        $region13: #{tpu_custom_call.1} parent=11 // pred_check
          %p233 = pneg %p138
        $region14: #{tpu_custom_call.1} parent=11 // pred_check_branch
          %235 = sbr.rel (%p233) target = $region16
        $region15: #{tpu_custom_call.1} parent=11 // pred_region
          _
        $region16: #{tpu_custom_call.1} parent=11 // pred_fallthru
          _
      $region12: #{tpu_custom_call.1} parent=5 // pred_fallthru
        _
      %p236 = scmp.lt.s32.totalorder %s18, 8
      // Predicated region
      $region17: #{tpu_custom_call.1} parent=5 // pred_check
        %p237 = pneg %p236
      $region18: #{tpu_custom_call.1} parent=5 // pred_check_branch
        %239 = sbr.rel (%p237) target = $region20
      $region19: #{tpu_custom_call.1} parent=5 // pred_region
        // Predicated region
        $region21: #{tpu_custom_call.1} parent=19 // pred_check
          %p240 = pneg %p59
        $region22: #{tpu_custom_call.1} parent=19 // pred_check_branch
          %242 = sbr.rel (%p240) target = $region24
        $region23: #{tpu_custom_call.1} parent=19 // pred_region
          %s243 = sand.u32 %s49, 1
          %s244 = scalar_lea.sflag [#allocation3], %s243
          %s245 = sand.u32 %s49, 1
          %s246 = smul.addr %s245, 40
          %s247 = scalar_lea.vmem [#allocation2], %s246
          %s249 = ssub.s32 640, 640
          %250 = vsyncadd %s244, %s249
          %s251 = smul.addr %s25, 10
          %s252 = sadd.s32 %s27, %s251
          %s253 = smul.addr %s252, 128
          %s254 = scalar_lea.hbm %s0, %s253
          %s255 = sshll.u32 %s247, 4
          %s256 = int_to_ptr.vmem [resolvable:$true] %s255
          %261 = dma.hbm_to_vmem [thread:$0]  %s254, 640, %s256, %s244, 256, 128, 8
        $region24: #{tpu_custom_call.1} parent=19 // pred_fallthru
          _
        // Predicated region
        $region25: #{tpu_custom_call.1} parent=19 // pred_check
          %p262 = pneg %p85
        $region26: #{tpu_custom_call.1} parent=19 // pred_check_branch
          %264 = sbr.rel (%p262) target = $region28
        $region27: #{tpu_custom_call.1} parent=19 // pred_region
          %p265 = scmp.lt.s32.totalorder %s26, 1
          %s266 = scalar_select %p265, %s26, 1
          %s267 = smul.addr %s266, 8
          %s268 = scalar_lea.vmem %s1, %s267
        $region28: #{tpu_custom_call.1} parent=19 // pred_fallthru
          _
        // Predicated region
        $region29: #{tpu_custom_call.1} parent=19 // pred_check
          %p269 = pneg %p111
        $region30: #{tpu_custom_call.1} parent=19 // pred_check_branch
          %271 = sbr.rel (%p269) target = $region32
        $region31: #{tpu_custom_call.1} parent=19 // pred_region
          %p272 = scmp.lt.s32.totalorder %s26, 1
          %s273 = scalar_select %p272, %s26, 1
          %s274 = smul.addr %s273, 8
          %s275 = scalar_lea.vmem %s2, %s274
        $region32: #{tpu_custom_call.1} parent=19 // pred_fallthru
          _
        // Predicated region
        $region33: #{tpu_custom_call.1} parent=19 // pred_check
          %p276 = pneg %p158
        $region34: #{tpu_custom_call.1} parent=19 // pred_check_branch
          %278 = sbr.rel (%p276) target = $region36
        $region35: #{tpu_custom_call.1} parent=19 // pred_region
          %p279 = scmp.lt.s32.totalorder %s26, 1
          %s280 = scalar_select %p279, %s26, 1
          %s281 = smul.addr %s280, 8
          %s282 = scalar_lea.vmem %s4, %s281
        $region36: #{tpu_custom_call.1} parent=19 // pred_fallthru
          _
        // Predicated region
        $region37: #{tpu_custom_call.1} parent=19 // pred_check
          %p283 = pneg %p184
        $region38: #{tpu_custom_call.1} parent=19 // pred_check_branch
          %285 = sbr.rel (%p283) target = $region40
        $region39: #{tpu_custom_call.1} parent=19 // pred_region
          %p286 = scmp.lt.s32.totalorder %s26, 1
          %s287 = scalar_select %p286, %s26, 1
          %s288 = smul.addr %s287, 8
          %s289 = scalar_lea.vmem %s5, %s288
        $region40: #{tpu_custom_call.1} parent=19 // pred_fallthru
          _
      $region20: #{tpu_custom_call.1} parent=5 // pred_fallthru
        _
      %p290 = scmp.le.s32.totalorder 1, %s18
      %p291 = scmp.lt.s32.totalorder %s18, 9
      %p292 = pnand %p290, %p291
      %p293 = pneg %p292
      // Predicated region
      $region41: #{tpu_custom_call.1} parent=5 // pred_check
        _
      $region42: #{tpu_custom_call.1} parent=5 // pred_check_branch
        %295 = sbr.rel (%p292) target = $region44
      $region43: #{tpu_custom_call.1} parent=5 // pred_region
        %s296 = ssub.s32 %s18, 1
        %s297 = sand.u32 %s52, 1
        %s298 = scalar_lea.sflag [#allocation3], %s297
        %s299 = sand.u32 %s52, 1
        %s300 = smul.addr %s299, 40
        %s301 = scalar_lea.vmem [#allocation2], %s300
        // Predicated region
        $region45: #{tpu_custom_call.1} parent=43 // pred_check
          %p302 = pneg %p65
        $region46: #{tpu_custom_call.1} parent=43 // pred_check_branch
          %304 = sbr.rel (%p302) target = $region48
        $region47: #{tpu_custom_call.1} parent=43 // pred_region
          %305 = dma.done %s298, 640
        $region48: #{tpu_custom_call.1} parent=43 // pred_fallthru
          _
        %s306 = sand.u32 %s52, 1
        %s307 = scalar_lea.sflag [#allocation3], %s306
        %s308 = sand.u32 %s52, 1
        %s309 = smul.addr %s308, 40
        %s310 = scalar_lea.vmem [#allocation2], %s309
        %p311 = pneg %p65
        %p312 = pneg %p62
        %p313 = scmp.lt.s32.totalorder %s29, 1
        %s314 = scalar_select %p313, %s29, 1
        %s315 = smul.addr %s314, 8
        %s316 = scalar_lea.vmem %s1, %s315
        %p317 = pneg %p91
        %p318 = pneg %p88
        %p319 = scmp.lt.s32.totalorder %s29, 1
        %s320 = scalar_select %p319, %s29, 1
        %s321 = smul.addr %s320, 8
        %s322 = scalar_lea.vmem %s2, %s321
        %p323 = pneg %p117
        %p324 = pneg %p114
        %p325 = pneg %p138
        %p326 = pneg %p135
        %p327 = scmp.lt.s32.totalorder %s29, 1
        %s328 = scalar_select %p327, %s29, 1
        %s329 = smul.addr %s328, 8
        %s330 = scalar_lea.vmem %s4, %s329
        %p331 = pneg %p164
        %p332 = pneg %p161
        %p333 = scmp.lt.s32.totalorder %s29, 1
        %s334 = scalar_select %p333, %s29, 1
        %s335 = smul.addr %s334, 8
        %s336 = scalar_lea.vmem %s5, %s335
        %p337 = pneg %p190
        %p338 = pneg %p187
        %p339 = pneg %p218
        %p340 = pneg %p215
        %s341 = sand.u32 %s205, 1
        %s342 = scalar_lea.sflag [#allocation4], %s341
        %s343 = sand.u32 %s205, 1
        %s344 = smul.addr %s343, 16
        %s345 = scalar_lea.vmem [#allocation5], %s344
        %p346 = scmp.lt.s32.totalorder %s29, 1
        %s347 = scalar_select %p346, %s29, 1
        %s348 = smul.addr %s347, 8
        %s349 = scalar_lea.vmem %s1, %s348
        %p350 = scmp.lt.s32.totalorder %s29, 1
        %s351 = scalar_select %p350, %s29, 1
        %s352 = smul.addr %s351, 8
        %s353 = scalar_lea.vmem %s2, %s352
        %p354 = scmp.lt.s32.totalorder %s29, 1
        %s355 = scalar_select %p354, %s29, 1
        %s356 = smul.addr %s355, 8
        %s357 = scalar_lea.vmem %s4, %s356
        %p358 = scmp.lt.s32.totalorder %s29, 1
        %s359 = scalar_select %p358, %s29, 1
        %s360 = smul.addr %s359, 8
        %s361 = scalar_lea.vmem %s5, %s360
        %v362 = vld [vmem:[%s349] sm:$0xff]
        %v363 = vld [vmem:[%s301] sm:$0xff]
        %v364 = vld [vmem:[%s301 + $0x8] sm:$0xff]
        %v365 = vld [vmem:[%s301 + $0x10] sm:$0xff]
        %v366 = vld [vmem:[%s301 + $0x18] sm:$0xff]
        %v367 = vld [vmem:[%s301 + $0x20] sm:$0xff]
        %v368 = vld [vmem:[%s353] sm:$0xff]
        %370 = vset.pattern.permute.xlu0 0
        %371 = vperm.xlu0 %370, %v368
        %v372 = vpop.permute.xlu0 %371
        %vm374 = vcmask 326656
        %v376 = vsel %vm374, %v362, 0
        %378 = vmatprep.subr.mxu0 0.0
        %379 = vmatpush1.msra.mxu0 %v363
        %380 = vmatprep.subr.mxu0 0.0
        %381 = vmatpush1.msra.mxu0 %v364
        %382 = vmatprep.subr.mxu0 0.0
        %383 = vmatpush1.msra.mxu0 %v365
        %384 = vmatprep.subr.mxu0 0.0
        %385 = vmatpush1.msra.mxu0 %v366
        %386 = vmatprep.subr.mxu0 0.0
        %387 = vmatpush1.msra.mxu0 %v367
        %388 = vmatprep.subr.mxu0 0.0
        %389 = vmatpush1.msra.mxu0 0.0
        %390 = vmatprep.subr.mxu0 0.0
        %391 = vmatpush1.msra.mxu0 0.0
        %392 = vmatprep.subr.mxu0 0.0
        %393 = vmatpush1.msra.mxu0 0.0
        %394 = vmatprep.subr.mxu0 0.0
        %395 = vmatpush1.msra.mxu0 0.0
        %396 = vmatprep.subr.mxu0 0.0
        %397 = vmatpush1.msra.mxu0 0.0
        %398 = vmatprep.subr.mxu0 0.0
        %399 = vmatpush1.msra.mxu0 0.0
        %400 = vmatprep.subr.mxu0 0.0
        %401 = vmatpush1.msra.mxu0 0.0
        %402 = vmatprep.subr.mxu0 0.0
        %403 = vmatpush1.msra.mxu0 0.0
        %404 = vmatprep.subr.mxu0 0.0
        %405 = vmatpush1.msra.mxu0 0.0
        %406 = vmatprep.subr.mxu0 0.0
        %407 = vmatpush1.msra.mxu0 0.0
        %408 = vmatprep.subr.mxu0 0.0
        %409 = vmatpush1.msra.mxu0 0.0
        %410 = vmatprep.subr.mxu0 0.0
        %411 = vmatpush1.msra.mxu0 0.0
        %412 = vmatprep.subr.mxu0 0.0
        %413 = vmatpush1.msra.mxu0 0.0
        %414 = vmatprep.subr.mxu0 0.0
        %415 = vmatpush1.msra.mxu0 0.0
        %416 = vmatprep.subr.mxu0 0.0
        %417 = vmatpush1.msra.mxu0 0.0
        %418 = vmatprep.subr.mxu0 0.0
        %419 = vmatpush1.msra.mxu0 0.0
        %420 = vmatprep.subr.mxu0 0.0
        %421 = vmatpush1.msra.mxu0 0.0
        %422 = vmatprep.subr.mxu0 0.0
        %423 = vmatpush1.msra.mxu0 0.0
        %424 = vmatprep.subr.mxu0 0.0
        %425 = vmatpush1.msra.mxu0 0.0
        %426 = vmatprep.subr.mxu0 0.0
        %427 = vmatpush1.msra.mxu0 0.0
        %428 = vmatprep.subr.mxu0 0.0
        %429 = vmatpush1.msra.mxu0 0.0
        %430 = vmatprep.subr.mxu0 0.0
        %431 = vmatpush1.msra.mxu0 0.0
        %432 = vmatprep.subr.mxu0 0.0
        %433 = vmatpush1.msra.mxu0 0.0
        %434 = vmatprep.subr.mxu0 0.0
        %435 = vmatpush1.msra.mxu0 0.0
        %436 = vmatprep.subr.mxu0 0.0
        %437 = vmatpush1.msra.mxu0 0.0
        %438 = vmatprep.subr.mxu0 0.0
        %439 = vmatpush1.msra.mxu0 0.0
        %440 = vmatprep.subr.mxu0 0.0
        %441 = vmatpush1.msra.mxu0 0.0
        %442 = vmatprep.mubr.f32.mxu0 0.0
        %443 = vmatmul.mubr.f32.gmra.mrb[0].mxu0 %v376
        %v444 = vpop.f32.mrb[0].mxu0
        %v445 = vadd.f32 %v372, %v444
        %v446 = vpop.f32.mrb[0].mxu0
        %447 = vdwg.mxu0
        %s448 = smul.u32 %s30, 128
        %s449 = sshra.s32 %s448, 7
        %s450 = sand.u32 %s448, 127
        %s451 = smul.addr %s449, 8
        %s452 = scalar_lea.vmem %s345, %s451 [#allocation5]
        %453 = vst [vmem:[%s452] sm:$0xff] %v445
        %p454 = scmp.eq.s32.totalorder %s30, 1
        // Predicated region
        $region49: #{tpu_custom_call.1} parent=43 // pred_check
          %p455 = pneg %p454
        $region50: #{tpu_custom_call.1} parent=43 // pred_check_branch
          %457 = sbr.rel (%p455) target = $region52
        $region51: #{tpu_custom_call.1} parent=43 // pred_region
          %v458 = vld [vmem:[%s345] sm:$0xff]
          %v459 = vld [vmem:[%s345 + $0x8] sm:$0xff]
          %v460 = vadd.f32 %v458, %v459
          %461 = vadd.xlane.f32.xlu0 %v460
          %v462 = vpop.xlane.xlu0 %461
          %v463 = vld [vmem:[%s3] sm:$0xff]
          %vm464 = vcmask 64512
          %v466 = vsel %vm464, %v463, 0
          %468 = vmatprep.subr.mxu0 0.0
          %469 = vmatpush1.msra.mxu0 %v462
          %470 = vmatprep.subr.mxu0 0.0
          %471 = vmatpush1.msra.mxu0 0.0
          %472 = vmatprep.subr.mxu0 0.0
          %473 = vmatpush1.msra.mxu0 0.0
          %474 = vmatprep.subr.mxu0 0.0
          %475 = vmatpush1.msra.mxu0 0.0
          %476 = vmatprep.subr.mxu0 0.0
          %477 = vmatpush1.msra.mxu0 0.0
          %478 = vmatprep.subr.mxu0 0.0
          %479 = vmatpush1.msra.mxu0 0.0
          %480 = vmatprep.subr.mxu0 0.0
          %481 = vmatpush1.msra.mxu0 0.0
          %482 = vmatprep.subr.mxu0 0.0
          %483 = vmatpush1.msra.mxu0 0.0
          %484 = vmatprep.subr.mxu0 0.0
          %485 = vmatpush1.msra.mxu0 0.0
          %486 = vmatprep.subr.mxu0 0.0
          %487 = vmatpush1.msra.mxu0 0.0
          %488 = vmatprep.subr.mxu0 0.0
          %489 = vmatpush1.msra.mxu0 0.0
          %490 = vmatprep.subr.mxu0 0.0
          %491 = vmatpush1.msra.mxu0 0.0
          %492 = vmatprep.subr.mxu0 0.0
          %493 = vmatpush1.msra.mxu0 0.0
          %494 = vmatprep.subr.mxu0 0.0
          %495 = vmatpush1.msra.mxu0 0.0
          %496 = vmatprep.subr.mxu0 0.0
          %497 = vmatpush1.msra.mxu0 0.0
          %498 = vmatprep.subr.mxu0 0.0
          %499 = vmatpush1.msra.mxu0 0.0
          %500 = vmatprep.subr.mxu0 0.0
          %501 = vmatpush1.msra.mxu0 0.0
          %502 = vmatprep.subr.mxu0 0.0
          %503 = vmatpush1.msra.mxu0 0.0
          %504 = vmatprep.subr.mxu0 0.0
          %505 = vmatpush1.msra.mxu0 0.0
          %506 = vmatprep.subr.mxu0 0.0
          %507 = vmatpush1.msra.mxu0 0.0
          %508 = vmatprep.subr.mxu0 0.0
          %509 = vmatpush1.msra.mxu0 0.0
          %510 = vmatprep.subr.mxu0 0.0
          %511 = vmatpush1.msra.mxu0 0.0
          %512 = vmatprep.subr.mxu0 0.0
          %513 = vmatpush1.msra.mxu0 0.0
          %514 = vmatprep.subr.mxu0 0.0
          %515 = vmatpush1.msra.mxu0 0.0
          %516 = vmatprep.subr.mxu0 0.0
          %517 = vmatpush1.msra.mxu0 0.0
          %518 = vmatprep.subr.mxu0 0.0
          %519 = vmatpush1.msra.mxu0 0.0
          %520 = vmatprep.subr.mxu0 0.0
          %521 = vmatpush1.msra.mxu0 0.0
          %522 = vmatprep.subr.mxu0 0.0
          %523 = vmatpush1.msra.mxu0 0.0
          %524 = vmatprep.subr.mxu0 0.0
          %525 = vmatpush1.msra.mxu0 0.0
          %526 = vmatprep.subr.mxu0 0.0
          %527 = vmatpush1.msra.mxu0 0.0
          %528 = vmatprep.subr.mxu0 0.0
          %529 = vmatpush1.msra.mxu0 0.0
          %530 = vmatprep.subr.mxu0 0.0
          %531 = vmatpush1.msra.mxu0 0.0
          %532 = vmatprep.mubr.f32.mxu0 0.0
          %533 = vmatmul.mubr.f32.gmra.mrb[0].mxu0 %v466
          %v534 = vpop.f32.mrb[0].mxu0
          %v535 = vadd.f32 0.0, %v534
          %v536 = vpop.f32.mrb[0].mxu0
          %537 = vdwg.mxu0
          %v538 = vmul.f32 %v535, 0.001953125
          %540 = vset.pattern.permute.xlu0 0
          %541 = vperm.xlu0 %540, %v538
          %v542 = vpop.permute.xlu0 %541
          %v544 = vsub.f32 %v458, %v542
          %v545 = vsub.f32 %v459, %v542
          %v546 = vmul.f32 %v544, %v544
          %v547 = vmul.f32 %v545, %v545
          %v548 = vadd.f32 %v546, %v547
          %549 = vadd.xlane.f32.xlu0 %v548
          %v550 = vpop.xlane.xlu0 %549
          %551 = vmatprep.subr.mxu0 0.0
          %552 = vmatpush1.msra.mxu0 %v550
          %553 = vmatprep.subr.mxu0 0.0
          %554 = vmatpush1.msra.mxu0 0.0
          %555 = vmatprep.subr.mxu0 0.0
          %556 = vmatpush1.msra.mxu0 0.0
          %557 = vmatprep.subr.mxu0 0.0
          %558 = vmatpush1.msra.mxu0 0.0
          %559 = vmatprep.subr.mxu0 0.0
          %560 = vmatpush1.msra.mxu0 0.0
          %561 = vmatprep.subr.mxu0 0.0
          %562 = vmatpush1.msra.mxu0 0.0
          %563 = vmatprep.subr.mxu0 0.0
          %564 = vmatpush1.msra.mxu0 0.0
          %565 = vmatprep.subr.mxu0 0.0
          %566 = vmatpush1.msra.mxu0 0.0
          %567 = vmatprep.subr.mxu0 0.0
          %568 = vmatpush1.msra.mxu0 0.0
          %569 = vmatprep.subr.mxu0 0.0
          %570 = vmatpush1.msra.mxu0 0.0
          %571 = vmatprep.subr.mxu0 0.0
          %572 = vmatpush1.msra.mxu0 0.0
          %573 = vmatprep.subr.mxu0 0.0
          %574 = vmatpush1.msra.mxu0 0.0
          %575 = vmatprep.subr.mxu0 0.0
          %576 = vmatpush1.msra.mxu0 0.0
          %577 = vmatprep.subr.mxu0 0.0
          %578 = vmatpush1.msra.mxu0 0.0
          %579 = vmatprep.subr.mxu0 0.0
          %580 = vmatpush1.msra.mxu0 0.0
          %581 = vmatprep.subr.mxu0 0.0
          %582 = vmatpush1.msra.mxu0 0.0
          %583 = vmatprep.subr.mxu0 0.0
          %584 = vmatpush1.msra.mxu0 0.0
          %585 = vmatprep.subr.mxu0 0.0
          %586 = vmatpush1.msra.mxu0 0.0
          %587 = vmatprep.subr.mxu0 0.0
          %588 = vmatpush1.msra.mxu0 0.0
          %589 = vmatprep.subr.mxu0 0.0
          %590 = vmatpush1.msra.mxu0 0.0
          %591 = vmatprep.subr.mxu0 0.0
          %592 = vmatpush1.msra.mxu0 0.0
          %593 = vmatprep.subr.mxu0 0.0
          %594 = vmatpush1.msra.mxu0 0.0
          %595 = vmatprep.subr.mxu0 0.0
          %596 = vmatpush1.msra.mxu0 0.0
          %597 = vmatprep.subr.mxu0 0.0
          %598 = vmatpush1.msra.mxu0 0.0
          %599 = vmatprep.subr.mxu0 0.0
          %600 = vmatpush1.msra.mxu0 0.0
          %601 = vmatprep.subr.mxu0 0.0
          %602 = vmatpush1.msra.mxu0 0.0
          %603 = vmatprep.subr.mxu0 0.0
          %604 = vmatpush1.msra.mxu0 0.0
          %605 = vmatprep.subr.mxu0 0.0
          %606 = vmatpush1.msra.mxu0 0.0
          %607 = vmatprep.subr.mxu0 0.0
          %608 = vmatpush1.msra.mxu0 0.0
          %609 = vmatprep.subr.mxu0 0.0
          %610 = vmatpush1.msra.mxu0 0.0
          %611 = vmatprep.subr.mxu0 0.0
          %612 = vmatpush1.msra.mxu0 0.0
          %613 = vmatprep.subr.mxu0 0.0
          %614 = vmatpush1.msra.mxu0 0.0
          %615 = vmatprep.mubr.f32.mxu0 0.0
          %616 = vmatmul.mubr.f32.gmra.mrb[0].mxu0 %v466
          %v617 = vpop.f32.mrb[0].mxu0
          %v618 = vadd.f32 0.0, %v617
          %v619 = vpop.f32.mrb[0].mxu0
          %620 = vdwg.mxu0
          %v621 = vmul.f32 %v618, 0.001953125
          %v622 = vadd.f32 %v621, 1e-05
          %v623 = vrsqrt.pop %v622
          %v624 = vld [vmem:[%s357] sm:$0xff]
          %v625 = vmul.f32 %v623, %v624
          %627 = vset.pattern.permute.xlu0 0
          %628 = vperm.xlu0 %627, %v625
          %v629 = vpop.permute.xlu0 %628
          %v631 = vmul.f32 %v544, %v629
          %v632 = vmul.f32 %v545, %v629
          %v633 = vld [vmem:[%s361] sm:$0xff]
          %635 = vset.pattern.permute.xlu0 0
          %636 = vperm.xlu0 %635, %v633
          %v637 = vpop.permute.xlu0 %636
          %v639 = vadd.f32 %v631, %v637
          %v640 = vadd.f32 %v632, %v637
          %v641 = vxor.u32 %v639, 2147483648
          %v642 = vxor.u32 %v640, 2147483648
          %v643 = vmul.f32 %v641, 1.442695
          %v644 = vpow.pop %v643
          %v645 = vmul.f32 %v642, 1.442695
          %v646 = vpow.pop %v645
          %v647 = vadd.f32 %v644, 1.0
          %v648 = vadd.f32 %v646, 1.0
          %v649 = vrcp.pop %v647
          %v650 = vmul.f32 1.0, %v649
          %v651 = vrcp.pop %v648
          %v652 = vmul.f32 1.0, %v651
          %v653 = vmul.f32 %v639, %v650
          %v654 = vmul.f32 %v640, %v652
          %655 = vst [vmem:[%s345] sm:$0xff] %v653
          %656 = vst [vmem:[%s345 + $0x8] sm:$0xff] %v654
        $region52: #{tpu_custom_call.1} parent=43 // pred_fallthru
          _
        %s657 = sand.u32 %s205, 1
        %s658 = scalar_lea.sflag [#allocation4], %s657
        %s659 = sand.u32 %s205, 1
        %s660 = smul.addr %s659, 16
        %s661 = scalar_lea.vmem [#allocation5], %s660
        // Predicated region
        $region53: #{tpu_custom_call.1} parent=43 // pred_check
          %p662 = pneg %p215
        $region54: #{tpu_custom_call.1} parent=43 // pred_check_branch
          %664 = sbr.rel (%p662) target = $region56
        $region55: #{tpu_custom_call.1} parent=43 // pred_region
          %s666 = ssub.s32 256, 256
          %667 = vsyncadd %s658, %s666
          %s668 = smul.addr %s29, 2
          %s669 = smul.addr %s28, 4
          %s670 = sadd.s32 %s668, %s669
          %s671 = smul.addr %s670, 128
          %s672 = scalar_lea.hbm %s6, %s671
          %s674 = sshll.u32 %s661, 4
          %s675 = int_to_ptr.vmem [resolvable:$true] %s674
          %677 = dma.vmem_to_hbm [thread:$0]  %s675, 256, %s672, %s658
        $region56: #{tpu_custom_call.1} parent=43 // pred_fallthru
          _
      $region44: #{tpu_custom_call.1} parent=5 // pred_fallthru
        _
      %p678 = scmp.le.s32.totalorder 2, %s18
      // Predicated region
      $region57: #{tpu_custom_call.1} parent=5 // pred_check
        %p679 = pneg %p678
      $region58: #{tpu_custom_call.1} parent=5 // pred_check_branch
        %681 = sbr.rel (%p679) target = $region60
      $region59: #{tpu_custom_call.1} parent=5 // pred_region
        %s682 = ssub.s32 %s18, 2
        // Predicated region
        $region61: #{tpu_custom_call.1} parent=59 // pred_check
          %p683 = pneg %p221
        $region62: #{tpu_custom_call.1} parent=59 // pred_check_branch
          %685 = sbr.rel (%p683) target = $region64
        $region63: #{tpu_custom_call.1} parent=59 // pred_region
          %s686 = sand.u32 %s206, 1
          %s687 = scalar_lea.sflag [#allocation4], %s686
          %s688 = sand.u32 %s206, 1
          %s689 = smul.addr %s688, 16
          %s690 = scalar_lea.vmem [#allocation5], %s689
          %691 = dma.done %s687, 256
        $region64: #{tpu_custom_call.1} parent=59 // pred_fallthru
          _
      $region60: #{tpu_custom_call.1} parent=5 // pred_fallthru
        _
    $region6: #{tpu_custom_call.1} parent=1 // loop_footer
      %s22 = sadd.s32 1, %s18
    $region7: #{tpu_custom_call.1} parent=1 // loop_footer_branch
      %17 = sbr.rel target = $region3
    $region8: #{tpu_custom_call.1} parent=1 // loop_exit
      _
    %692 = vsyncpa [#allocation3], 1
    %s693 = scalar_lea.sflag [#allocation3], 1
    %694 = vsyncpa %s693, 1
    %695 = vsyncpa [#allocation4], 1
    %s696 = scalar_lea.sflag [#allocation4], 1
    %697 = vsyncpa %s696, 1

</llo_original>
